<compile_context>
chip_gen: v7x
topology: tpu7x:2x2x1
jax: 0.10.0
libtpu: 0.0.40
codegen_flags: <defaults>
</compile_context>

<pallas_src>
import math

import jax
import jax.numpy as jnp
from jax.experimental import pallas as pl
from jax.experimental.pallas import tpu as pltpu

# ---------------- IPA configuration (small, consistent with the module) ----------------
C_S = 32          # single-rep channels
C_Z = 16          # pair-rep channels
C_HIDDEN = 16     # per-head hidden dim (even, required by rotary)
NO_HEADS = 4
NO_QK_POINTS = 4
NO_V_POINTS = 8
INF = 1e5
EPS = 1e-8


# ---------------------------------- Pallas kernel ----------------------------------
def _ipa_attn_kernel(qc_ref, kc_ref, vc_ref, bias_ref, pz_ref, mq_ref, mk_ref,
                     ov_ref, opair_ref):
    """One (batch, query-tile, head) grid step.

    qc:    [tq, Kc]      packed queries (scale / c1 / sqrt(head_w) folded in wrapper)
    kc:    [H, Kc, N]    packed keys, per-batch resident, lane-dense in N
    vc:    [H, N, Cv]    packed values [v | v_pts], per-batch resident
    bias:  [tq, N]       scale*c2*linear_b(z)   (square mask is added here, in f32)
    pz:    [Cz4, tq, N]  down-projected pair rep, channel-major (lane-dense in N)
    mq:    [tq, 1]       query-position mask (f32)
    mk:    [1, N]        key-position mask (f32)
    ov:    [tq, Cv]      normalized a @ [v | v_pts]
    opair: [tq, Cz4]     normalized sum_j a[i,j] * pz[c,i,j]
    """
    h = pl.program_id(2)

    qc = qc_ref[...]
    kc = kc_ref[h]                                                     # [Kc, N]

    # fused scalar + point-attention logits: one MXU contraction over Kc
    logits = jnp.dot(qc, kc, preferred_element_type=jnp.float32)       # [tq, N]
    # pair bias + square-mask bias (mask built from the tiny per-position vectors, f32)
    mask_bias = INF * (mq_ref[...] * mk_ref[...] - 1.0)
    logits = logits + bias_ref[...].astype(jnp.float32) + mask_bias

    # softmax over keys (f32); normalization deferred to the small outputs
    m = jnp.max(logits, axis=-1, keepdims=True)
    e = jnp.exp(logits - m)                                            # [tq, N]
    denom = jnp.sum(e, axis=-1, keepdims=True)                         # [tq, 1]
    recip = 1.0 / denom        # exact: tiny tensor, so the approx EUP recip isn't needed

    vc = vc_ref[h]                                                     # [N, Cv]
    ov = jnp.dot(e.astype(vc.dtype), vc, preferred_element_type=jnp.float32)
    ov_ref[...] = ov * recip                                           # [tq, Cv]

    # o_pair: explicit per-channel multiply + lane reduction so the full
    # [Cz4, tq, N] f32 product is never materialized in VMEM.
    cz = pz_ref.shape[0]
    cols = [jnp.sum(e * pz_ref[c].astype(jnp.float32), axis=-1, keepdims=True)
            for c in range(cz)]                                        # each [tq, 1]
    opair_ref[...] = jnp.concatenate(cols, axis=-1) * recip            # [tq, Cz4]


# ------------------------------ tiling / VMEM budgeting ------------------------------
def _vmem_capacity_bytes():
    try:
        return int(pltpu.get_tpu_info().vmem_capacity_bytes)
    except Exception:
        return 64 * 1024 * 1024   # conservative fallback (v7x physical per-TC VMEM)


def _round_up(x, m):
    return -(-x // m) * m


def _choose_q_tile(n, h, kc, cv, cz4, item, budget):
    """Largest query tile whose estimated pipelined VMEM working set fits `budget`."""
    def est(tq):
        f32 = 4
        streamed = (_round_up(tq, 8) * _round_up(kc, 128) * item            # qcat block
                    + _round_up(tq, 8) * _round_up(n, 128) * item           # bias block
                    + cz4 * _round_up(tq, 8) * _round_up(n, 128) * item     # pz block
                    + _round_up(tq, 8) * _round_up(cv, 128) * f32           # ov out
                    + _round_up(tq, 8) * 128 * f32)                         # opair out
        resident = (h * _round_up(kc, 8) * _round_up(n, 128) * item         # kcat [H,Kc,N]
                    + h * _round_up(n, 8) * _round_up(cv, 128) * item)      # vcat [H,N,Cv]
        temps = 4 * _round_up(tq, 8) * _round_up(n, 128) * f32              # logits/e/mask/prod
        return 2 * (streamed + resident) + temps                            # double-buffered
    cands = ([n] if n <= 1024 else []) + [t for t in (1024, 512, 256, 128)
                                          if t < n and n % t == 0]
    for tq in cands:
        if est(tq) <= budget:
            return tq
    # TODO(synk): fall back to a key-tiled online-softmax kernel when even the
    # smallest tile with full-N rows does not fit (very large N on 64 MiB v7x VMEM).
    return cands[-1] if cands else n


def ipa_attention_core_pallas(qcat, kcat_t, vcat, bias, pz_t, mask, q_tile=None):
    """qcat: [B,H,N,Kc], kcat_t: [B,H,Kc,N], vcat: [B,H,N,Cv], bias: [B,H,N,N],
    pz_t: [B,Cz4,N,N], mask: [B,N]."""
    B, H, N, Kc = qcat.shape
    Cv = vcat.shape[-1]
    Cz4 = pz_t.shape[1]
    item = jnp.dtype(qcat.dtype).itemsize
    cap = _vmem_capacity_bytes()
    tq = q_tile if q_tile is not None else _choose_q_tile(
        N, H, Kc, Cv, Cz4, item, int(0.7 * cap))
    assert N % tq == 0, (N, tq)
    nqt = N // tq

    mask_q = mask.astype(jnp.float32)[:, :, None]       # [B, N, 1]
    mask_k = mask.astype(jnp.float32)[:, None, :]       # [B, 1, N]

    out_shapes = (
        jax.ShapeDtypeStruct((B, H, N, Cv), jnp.float32),     # [v | v_pts] attention sums
        jax.ShapeDtypeStruct((B, H, N, Cz4), jnp.float32),    # o_pair
    )
    return pl.pallas_call(
        _ipa_attn_kernel,
        out_shape=out_shapes,
        grid=(B, nqt, H),
        in_specs=[
            pl.BlockSpec((None, None, tq, Kc), lambda b, qt, h: (b, h, qt, 0)),   # qcat
            # per-batch resident blocks: index constant in qt / h (innermost), so
            # k/v are DMA'd once per batch instead of once per grid step.
            pl.BlockSpec((None, H, Kc, N), lambda b, qt, h: (b, 0, 0, 0)),        # kcat_t
            pl.BlockSpec((None, H, N, Cv), lambda b, qt, h: (b, 0, 0, 0)),        # vcat
            pl.BlockSpec((None, None, tq, N), lambda b, qt, h: (b, h, qt, 0)),    # bias
            # per-batch pz: constant in h (innermost) -> revisited, not re-DMA'd.
            pl.BlockSpec((None, Cz4, tq, N), lambda b, qt, h: (b, 0, qt, 0)),     # pz
            pl.BlockSpec((None, tq, 1), lambda b, qt, h: (b, qt, 0)),             # mask_q
            pl.BlockSpec((None, 1, N), lambda b, qt, h: (b, 0, 0)),               # mask_k
        ],
        out_specs=(
            pl.BlockSpec((None, None, tq, Cv), lambda b, qt, h: (b, h, qt, 0)),
            pl.BlockSpec((None, None, tq, Cz4), lambda b, qt, h: (b, h, qt, 0)),
        ),
        compiler_params=pltpu.CompilerParams(
            dimension_semantics=("parallel", "parallel", "arbitrary"),
            vmem_limit_bytes=int(0.85 * cap)),
    )(qcat, kcat_t, vcat, bias, pz_t, mask_q, mask_k)


# ---------------------------------- glue helpers ----------------------------------
def softplus(x):
    return jnp.logaddexp(x, 0.0)


def rotate_half(x):
    half = x.shape[-1] // 2
    return jnp.concatenate([-x[..., half:], x[..., :half]], axis=-1)


def rotary_cos_sin(seq_len, dim, base=10000.0):
    # LlamaDynamicNTKScalingRotaryEmbedding with seq_len <= max_position_embeddings
    # reduces to the plain rotary cache.
    inv_freq = 1.0 / (base ** (jnp.arange(0, dim, 2, dtype=jnp.float32) / dim))
    t = jnp.arange(seq_len, dtype=jnp.float32)
    freqs = jnp.outer(t, inv_freq)
    emb = jnp.concatenate([freqs, freqs], axis=-1)
    return jnp.cos(emb), jnp.sin(emb)


def quat_to_rot(quat):
    quat = quat / jnp.linalg.norm(quat, axis=-1, keepdims=True)
    w, x, y, z = (quat[..., i] for i in range(4))
    r0 = jnp.stack([1 - 2 * (y * y + z * z), 2 * (x * y - w * z), 2 * (x * z + w * y)], axis=-1)
    r1 = jnp.stack([2 * (x * y + w * z), 1 - 2 * (x * x + z * z), 2 * (y * z - w * x)], axis=-1)
    r2 = jnp.stack([2 * (x * z - w * y), 2 * (y * z + w * x), 1 - 2 * (x * x + y * y)], axis=-1)
    return jnp.stack([r0, r1, r2], axis=-2)      # [..., 3, 3]


# ---------------------------------- full forward ----------------------------------
def ipa_forward(params, s, z, rots, trans, position_ids, mask,
                use_pallas=True, compute_dtype=jnp.bfloat16, q_tile=None):
    B, N, _ = s.shape
    H, C, Pq, Pv = NO_HEADS, C_HIDDEN, NO_QK_POINTS, NO_V_POINTS

    # ---- scalar q / k / v projections ----
    q = (s @ params['wq'] + params['bq']).reshape(B, N, H, C)
    kv = (s @ params['wkv'] + params['bkv']).reshape(B, N, H, 2 * C)
    k, v = kv[..., :C], kv[..., C:]

    # ---- point projections + rigid (R p + t) ----
    def to_points(raw, npts):
        # torch: split last dim into 3 chunks (x, y, z) then stack on a new last axis
        pts = jnp.moveaxis(raw.reshape(B, N, 3, H * npts), -2, -1)        # [B,N,H*npts,3]
        pts = jnp.einsum('bncd,bnpd->bnpc', rots, pts) + trans[:, :, None, :]
        return pts.reshape(B, N, H, npts, 3)

    q_pts = to_points(s @ params['wqp'] + params['bqp'], Pq)
    kv_pts = to_points(s @ params['wkvp'] + params['bkvp'], Pq + Pv)
    k_pts, v_pts = kv_pts[..., :Pq, :], kv_pts[..., Pq:, :]

    # ---- rotary embedding on scalar q / k ----
    cos, sin = rotary_cos_sin(N, C)
    cos_p = cos[position_ids][:, :, None, :]
    sin_p = sin[position_ids][:, :, None, :]
    q = q * cos_p + rotate_half(q) * sin_p
    k = k * cos_p + rotate_half(k) * sin_p

    # ---- [B, H, N, *] layouts ----
    q_t = jnp.transpose(q, (0, 2, 1, 3))
    k_t = jnp.transpose(k, (0, 2, 1, 3))
    v_t = jnp.transpose(v, (0, 2, 1, 3))

    head_w = softplus(params['head_weights']) * math.sqrt(1.0 / (3 * (Pq * 9.0 / 2)))
    sqrt_w = jnp.sqrt(head_w)                                             # [H]

    # Center the attention points by the per-batch mean translation: pairwise distances
    # are translation-invariant, and this avoids cancellation in the expanded
    # |qp|^2 + |kp|^2 - 2 qp.kp form (especially under bf16 operands).
    center = jnp.mean(trans, axis=1)[:, None, None, None, :]              # [B,1,1,1,3]
    qp_t = (jnp.transpose(q_pts - center, (0, 2, 1, 3, 4)) *
            sqrt_w[None, :, None, None, None]).reshape(B, H, N, Pq * 3)
    kp_t = (jnp.transpose(k_pts - center, (0, 2, 1, 3, 4)) *
            sqrt_w[None, :, None, None, None]).reshape(B, H, N, Pq * 3)
    vp_t = jnp.transpose(v_pts, (0, 2, 1, 3, 4)).reshape(B, H, N, Pv * 3)

    c1 = math.sqrt(1.0 / (3 * C))
    c2 = math.sqrt(1.0 / 3)
    scale = math.log(N, 256)

    if use_pallas:
        # ---- pack operands (fold c1 / scale / point-norm terms into one contraction) --
        q2 = jnp.sum(qp_t * qp_t, axis=-1, keepdims=True)                 # [B,H,N,1]
        k2 = jnp.sum(kp_t * kp_t, axis=-1, keepdims=True)
        ones = jnp.ones_like(q2)
        qcat = (jnp.concatenate([c1 * q_t, qp_t, -0.5 * q2, ones], axis=-1)
                * scale).astype(compute_dtype)                            # [B,H,N,30]
        kcat_t = jnp.swapaxes(
            jnp.concatenate([k_t, kp_t, ones, -0.5 * k2], axis=-1),
            -1, -2).astype(compute_dtype)                                 # [B,H,30,N]
        vcat = jnp.concatenate([v_t, vp_t], axis=-1).astype(compute_dtype)  # [B,H,N,40]
        # pair bias emitted directly in the [B,H,N,N] kernel layout with scale*c2 folded
        # into the projection; the square-mask bias is added in-kernel from [B,N] mask.
        bias = (jnp.einsum('bijc,ch->bhij', z, (scale * c2) * params['wb'])
                + (scale * c2) * params['bb'][None, :, None, None]).astype(compute_dtype)
        # down-projected pair rep emitted channel-major (lane-dense in N)
        pz_t = (jnp.einsum('bijc,cd->bdij', z, params['wdz'])
                + params['bdz'][None, :, None, None]).astype(compute_dtype)

        ov, opair_hn = ipa_attention_core_pallas(qcat, kcat_t, vcat, bias, pz_t,
                                                 mask, q_tile=q_tile)
        o = ov[..., :C]                                                   # [B,H,N,C]
        o_pt_g = ov[..., C:]                                              # [B,H,N,Pv*3]
        o_pair = jnp.transpose(opair_hn, (0, 2, 1, 3))                    # [B,N,H,Cz4]
    else:
        # ---- pure-JAX reference (mirrors the torch math; HIGHEST-precision dots) ----
        hp = jax.lax.Precision.HIGHEST
        b_t = jnp.transpose(z @ params['wb'] + params['bb'], (0, 3, 1, 2))
        pair_z = z @ params['wdz'] + params['bdz']
        mb = INF * (mask[:, :, None] * mask[:, None, :] - 1.0)
        logits = jnp.einsum('bhic,bhjc->bhij', q_t, k_t, precision=hp) * c1 + c2 * b_t
        disp = (qp_t.reshape(B, H, N, Pq, 3)[:, :, :, None] -
                kp_t.reshape(B, H, N, Pq, 3)[:, :, None, :])
        logits = logits - 0.5 * jnp.sum(disp ** 2, axis=(-2, -1))
        logits = logits * scale + mb[:, None, :, :]
        a = jax.nn.softmax(logits, axis=-1)
        o = jnp.einsum('bhij,bhjc->bhic', a, v_t, precision=hp)
        o_pt_g = jnp.einsum('bhij,bhjp->bhip', a, vp_t, precision=hp)
        o_pair = jnp.einsum('bhij,bijc->bihc', a, pair_z, precision=hp)   # [B,N,H,Cz4]

    # ---- assemble outputs (matches torch ordering) ----
    o_flat = jnp.transpose(o, (0, 2, 1, 3)).reshape(B, N, H * C)

    o_pt = jnp.transpose(o_pt_g.reshape(B, H, N, Pv, 3), (0, 2, 1, 3, 4))  # [B,N,H,Pv,3]
    # invert_apply:  R^T (p - t)
    o_pt_local = jnp.einsum('bncd,bnhpc->bnhpd', rots,
                            o_pt - trans[:, :, None, None, :])
    o_pt_dists = jnp.sqrt(jnp.sum(o_pt_local ** 2, axis=-1) + EPS)         # [B,N,H,Pv]
    o_pt_norm_feats = o_pt_dists.reshape(B, N, H * Pv)
    o_pt_flat = o_pt_local.reshape(B, N, H * Pv, 3)

    o_pair_flat = o_pair.reshape(B, N, -1)

    feats = jnp.concatenate(
        [o_flat,
         o_pt_flat[..., 0], o_pt_flat[..., 1], o_pt_flat[..., 2],
         o_pt_norm_feats,
         o_pair_flat], axis=-1)
    return feats @ params['wout'] + params['bout']


# ---------------------------------- main ----------------------------------
if __name__ == "__main__":
    B, N = 2, 8
    H, C, Pq, Pv = NO_HEADS, C_HIDDEN, NO_QK_POINTS, NO_V_POINTS
    hc = H * C
    concat_out_dim = C_Z // 4 + C + Pv * 4

    key = jax.random.PRNGKey(0)
    keys = jax.random.split(key, 16)

    def w(kk, shape):
        return jax.random.normal(kk, shape, jnp.float32) * 0.05

    params = {
        'wq': w(keys[0], (C_S, hc)), 'bq': jnp.zeros((hc,), jnp.float32),
        'wkv': w(keys[1], (C_S, 2 * hc)), 'bkv': jnp.zeros((2 * hc,), jnp.float32),
        'wqp': w(keys[2], (C_S, H * Pq * 3)), 'bqp': jnp.zeros((H * Pq * 3,), jnp.float32),
        'wkvp': w(keys[3], (C_S, H * (Pq + Pv) * 3)),
        'bkvp': jnp.zeros((H * (Pq + Pv) * 3,), jnp.float32),
        'wb': w(keys[4], (C_Z, H)), 'bb': jnp.zeros((H,), jnp.float32),
        'wdz': w(keys[5], (C_Z, C_Z // 4)), 'bdz': jnp.zeros((C_Z // 4,), jnp.float32),
        # softplus_inverse(1.0) — matches ipa_point_weights_init_
        'head_weights': jnp.full((H,), 0.541324854612918, jnp.float32),
        # NOTE: torch uses init='final' (all zeros) for linear_out; deterministic
        # small random weights are used here so the test output is non-trivial.
        'wout': w(keys[6], (H * concat_out_dim, C_S)), 'bout': jnp.zeros((C_S,), jnp.float32),
    }

    s = jax.random.normal(keys[7], (B, N, C_S), jnp.float32)
    z = jax.random.normal(keys[8], (B, N, N, C_Z), jnp.float32)
    rots = quat_to_rot(jax.random.normal(keys[9], (B, N, 4), jnp.float32))
    trans = jax.random.normal(keys[10], (B, N, 3), jnp.float32)
    position_ids = jnp.tile(jnp.arange(N), (B, 1))
    mask = jnp.ones((B, N), jnp.float32).at[:, -1].set(0.0)

    # pure-JAX reference (torch-equivalent math, HIGHEST-precision f32 dots)
    ref = jax.block_until_ready(
        ipa_forward(params, s, z, rots, trans, position_ids, mask, use_pallas=False))

    # Pallas kernel, f32 operand path.
    # Tolerance note: the kernel keeps softmax / normalization / accumulation in f32
    # and now uses an exact reciprocal, so on hardware (Mosaic's accurate f32 matmul
    # path) the error is ~1e-4.  The looser bound covers XLA's default-precision
    # (bf16-pass) evaluation of the packed logits contraction when the kernel is run
    # under the Pallas interpreter / default matmul precision.
    out_f32 = jax.block_until_ready(
        ipa_forward(params, s, z, rots, trans, position_ids, mask,
                    use_pallas=True, compute_dtype=jnp.float32))
    err_f32 = float(jnp.max(jnp.abs(out_f32 - ref)))
    assert err_f32 < 1e-2, f"f32 kernel/reference mismatch, max_err={err_f32}"

    # Pallas kernel, bf16 operand path (default; softmax / accumulation stay f32,
    # the +/-INF mask bias is applied in f32 inside the kernel).
    out_bf16 = jax.block_until_ready(
        ipa_forward(params, s, z, rots, trans, position_ids, mask,
                    use_pallas=True, compute_dtype=jnp.bfloat16))
    err_bf16 = float(jnp.max(jnp.abs(out_bf16 - ref)))
    assert err_bf16 < 3e-2, f"bf16 kernel/reference mismatch, max_err={err_bf16}"

    print("KERNEL_OK")
</pallas_src>

<mosaic_0001>
module attributes {stable_mosaic.version = 11 : i64} {
  func.func @_ipa_attn_kernel(%arg0: i32, %arg1: i32, %arg2: i32, %arg3: memref<1x1x8x30xf32, #tpu.memory_space<vmem>>, %arg4: memref<1x4x30x8xf32, #tpu.memory_space<vmem>>, %arg5: memref<1x4x8x40xf32, #tpu.memory_space<vmem>>, %arg6: memref<1x1x8x8xf32, #tpu.memory_space<vmem>>, %arg7: memref<1x4x8x8xf32, #tpu.memory_space<vmem>>, %arg8: memref<1x8x1xf32, #tpu.memory_space<vmem>>, %arg9: memref<1x1x8xf32, #tpu.memory_space<vmem>>, %arg10: memref<1x1x8x40xf32, #tpu.memory_space<vmem>>, %arg11: memref<1x1x8x4xf32, #tpu.memory_space<vmem>>) attributes {dimension_semantics = [#tpu.dimension_semantics<parallel>, #tpu.dimension_semantics<parallel>, #tpu.dimension_semantics<arbitrary>], iteration_bounds = array<i64: 2, 1, 4>, scalar_prefetch = 0 : i64, scratch_operands = 0 : i64, tpu.core_type = #tpu.core_type<tc>, window_params = [{transform_indices = @transform_0, window_bounds = array<i64: 1, 1, 8, 30>}, {transform_indices = @transform_1, window_bounds = array<i64: 1, 4, 30, 8>}, {transform_indices = @transform_2, window_bounds = array<i64: 1, 4, 8, 40>}, {transform_indices = @transform_3, window_bounds = array<i64: 1, 1, 8, 8>}, {transform_indices = @transform_4, window_bounds = array<i64: 1, 4, 8, 8>}, {transform_indices = @transform_5, window_bounds = array<i64: 1, 8, 1>}, {transform_indices = @transform_6, window_bounds = array<i64: 1, 1, 8>}, {transform_indices = @transform_7, window_bounds = array<i64: 1, 1, 8, 40>}, {transform_indices = @transform_8, window_bounds = array<i64: 1, 1, 8, 4>}]} {
    %c0 = arith.constant 0 : index
    %c0_0 = arith.constant 0 : index
    %c0_1 = arith.constant 0 : index
    %c0_2 = arith.constant 0 : index
    %0 = vector.load %arg3[%c0, %c0_0, %c0_1, %c0_2] : memref<1x1x8x30xf32, #tpu.memory_space<vmem>>, vector<1x1x8x30xf32>
    %1 = vector.shape_cast %0 : vector<1x1x8x30xf32> to vector<8x30xf32>
    %c0_3 = arith.constant 0 : index
    %2 = arith.index_cast %arg2 : i32 to index
    %c0_4 = arith.constant 0 : index
    %c0_5 = arith.constant 0 : index
    %3 = vector.load %arg4[%c0_3, %2, %c0_4, %c0_5] : memref<1x4x30x8xf32, #tpu.memory_space<vmem>>, vector<1x1x30x8xf32>
    %4 = vector.shape_cast %3 : vector<1x1x30x8xf32> to vector<30x8xf32>
    %cst = arith.constant dense<0.000000e+00> : vector<8x8xf32>
    %5 = tpu.matmul %1, %4, %cst {dimension_numbers = #tpu.dot_dimension_numbers<[1], [0], [0], [1], [0, 0, 1, 1], [], []>} : vector<8x30xf32>, vector<30x8xf32>, vector<8x8xf32> -> vector<8x8xf32>
    %c0_6 = arith.constant 0 : index
    %c0_7 = arith.constant 0 : index
    %c0_8 = arith.constant 0 : index
    %6 = vector.load %arg8[%c0_6, %c0_7, %c0_8] : memref<1x8x1xf32, #tpu.memory_space<vmem>>, vector<1x8x1xf32>
    %7 = vector.shape_cast %6 : vector<1x8x1xf32> to vector<8x1xf32>
    %c0_9 = arith.constant 0 : index
    %c0_10 = arith.constant 0 : index
    %c0_11 = arith.constant 0 : index
    %8 = vector.load %arg9[%c0_9, %c0_10, %c0_11] : memref<1x1x8xf32, #tpu.memory_space<vmem>>, vector<1x1x8xf32>
    %9 = vector.shape_cast %8 : vector<1x1x8xf32> to vector<1x8xf32>
    %10 = vector.broadcast %7 : vector<8x1xf32> to vector<8x8xf32>
    %11 = vector.broadcast %9 : vector<1x8xf32> to vector<8x8xf32>
    %12 = arith.mulf %10, %11 : vector<8x8xf32>
    %cst_12 = arith.constant 1.000000e+00 : f32
    %13 = vector.broadcast %cst_12 : f32 to vector<8x8xf32>
    %14 = arith.subf %12, %13 : vector<8x8xf32>
    %cst_13 = arith.constant 1.000000e+05 : f32
    %15 = vector.broadcast %cst_13 : f32 to vector<8x8xf32>
    %16 = arith.mulf %15, %14 : vector<8x8xf32>
    %c0_14 = arith.constant 0 : index
    %c0_15 = arith.constant 0 : index
    %c0_16 = arith.constant 0 : index
    %c0_17 = arith.constant 0 : index
    %17 = vector.load %arg6[%c0_14, %c0_15, %c0_16, %c0_17] : memref<1x1x8x8xf32, #tpu.memory_space<vmem>>, vector<1x1x8x8xf32>
    %18 = vector.shape_cast %17 : vector<1x1x8x8xf32> to vector<8x8xf32>
    %19 = arith.addf %5, %18 : vector<8x8xf32>
    %20 = arith.addf %19, %16 : vector<8x8xf32>
    %cst_18 = arith.constant dense<0xFF800000> : vector<8xf32>
    %21 = vector.multi_reduction <maximumf>, %20, %cst_18 [1] : vector<8x8xf32> to vector<8xf32>
    %22 = vector.shape_cast %21 : vector<8xf32> to vector<8x1xf32>
    %23 = vector.broadcast %22 : vector<8x1xf32> to vector<8x8xf32>
    %24 = arith.subf %20, %23 : vector<8x8xf32>
    %25 = math.exp %24 : vector<8x8xf32>
    %cst_19 = arith.constant dense<0.000000e+00> : vector<8xf32>
    %26 = vector.multi_reduction <add>, %25, %cst_19 [1] : vector<8x8xf32> to vector<8xf32>
    %27 = vector.shape_cast %26 : vector<8xf32> to vector<8x1xf32>
    %cst_20 = arith.constant 1.000000e+00 : f32
    %28 = vector.broadcast %cst_20 : f32 to vector<8x1xf32>
    %29 = arith.divf %28, %27 : vector<8x1xf32>
    %c0_21 = arith.constant 0 : index
    %30 = arith.index_cast %arg2 : i32 to index
    %c0_22 = arith.constant 0 : index
    %c0_23 = arith.constant 0 : index
    %31 = vector.load %arg5[%c0_21, %30, %c0_22, %c0_23] : memref<1x4x8x40xf32, #tpu.memory_space<vmem>>, vector<1x1x8x40xf32>
    %32 = vector.shape_cast %31 : vector<1x1x8x40xf32> to vector<8x40xf32>
    %cst_24 = arith.constant dense<0.000000e+00> : vector<8x40xf32>
    %33 = tpu.matmul %25, %32, %cst_24 {dimension_numbers = #tpu.dot_dimension_numbers<[1], [0], [0], [1], [0, 0, 1, 1], [], []>} : vector<8x8xf32>, vector<8x40xf32>, vector<8x40xf32> -> vector<8x40xf32>
    %34 = vector.broadcast %29 : vector<8x1xf32> to vector<8x40xf32>
    %35 = arith.mulf %33, %34 : vector<8x40xf32>
    %c0_25 = arith.constant 0 : index
    %c0_26 = arith.constant 0 : index
    %c0_27 = arith.constant 0 : index
    %c0_28 = arith.constant 0 : index
    %36 = vector.load %arg10[%c0_25, %c0_26, %c0_27, %c0_28] : memref<1x1x8x40xf32, #tpu.memory_space<vmem>>, vector<1x1x8x40xf32>
    %37 = vector.shape_cast %36 : vector<1x1x8x40xf32> to vector<8x40xf32>
    %38 = vector.shape_cast %35 : vector<8x40xf32> to vector<1x1x8x40xf32>
    tpu.vector_store %arg10[%c0_25, %c0_26, %c0_27, %c0_28], %38 {strides = array<i32>} : memref<1x1x8x40xf32, #tpu.memory_space<vmem>>, vector<1x1x8x40xf32>,
    %c0_29 = arith.constant 0 : index
    %c0_30 = arith.constant 0 : index
    %c0_31 = arith.constant 0 : index
    %c0_32 = arith.constant 0 : index
    %39 = vector.load %arg7[%c0_29, %c0_30, %c0_31, %c0_32] : memref<1x4x8x8xf32, #tpu.memory_space<vmem>>, vector<1x1x8x8xf32>
    %40 = vector.shape_cast %39 : vector<1x1x8x8xf32> to vector<8x8xf32>
    %41 = arith.mulf %25, %40 : vector<8x8xf32>
    %cst_33 = arith.constant dense<0.000000e+00> : vector<8xf32>
    %42 = vector.multi_reduction <add>, %41, %cst_33 [1] : vector<8x8xf32> to vector<8xf32>
    %43 = vector.shape_cast %42 : vector<8xf32> to vector<8x1xf32>
    %c0_34 = arith.constant 0 : index
    %c1 = arith.constant 1 : index
    %c0_35 = arith.constant 0 : index
    %c0_36 = arith.constant 0 : index
    %44 = vector.load %arg7[%c0_34, %c1, %c0_35, %c0_36] : memref<1x4x8x8xf32, #tpu.memory_space<vmem>>, vector<1x1x8x8xf32>
    %45 = vector.shape_cast %44 : vector<1x1x8x8xf32> to vector<8x8xf32>
    %46 = arith.mulf %25, %45 : vector<8x8xf32>
    %cst_37 = arith.constant dense<0.000000e+00> : vector<8xf32>
    %47 = vector.multi_reduction <add>, %46, %cst_37 [1] : vector<8x8xf32> to vector<8xf32>
    %48 = vector.shape_cast %47 : vector<8xf32> to vector<8x1xf32>
    %c0_38 = arith.constant 0 : index
    %c2 = arith.constant 2 : index
    %c0_39 = arith.constant 0 : index
    %c0_40 = arith.constant 0 : index
    %49 = vector.load %arg7[%c0_38, %c2, %c0_39, %c0_40] : memref<1x4x8x8xf32, #tpu.memory_space<vmem>>, vector<1x1x8x8xf32>
    %50 = vector.shape_cast %49 : vector<1x1x8x8xf32> to vector<8x8xf32>
    %51 = arith.mulf %25, %50 : vector<8x8xf32>
    %cst_41 = arith.constant dense<0.000000e+00> : vector<8xf32>
    %52 = vector.multi_reduction <add>, %51, %cst_41 [1] : vector<8x8xf32> to vector<8xf32>
    %53 = vector.shape_cast %52 : vector<8xf32> to vector<8x1xf32>
    %c0_42 = arith.constant 0 : index
    %c3 = arith.constant 3 : index
    %c0_43 = arith.constant 0 : index
    %c0_44 = arith.constant 0 : index
    %54 = vector.load %arg7[%c0_42, %c3, %c0_43, %c0_44] : memref<1x4x8x8xf32, #tpu.memory_space<vmem>>, vector<1x1x8x8xf32>
    %55 = vector.shape_cast %54 : vector<1x1x8x8xf32> to vector<8x8xf32>
    %56 = arith.mulf %25, %55 : vector<8x8xf32>
    %cst_45 = arith.constant dense<0.000000e+00> : vector<8xf32>
    %57 = vector.multi_reduction <add>, %56, %cst_45 [1] : vector<8x8xf32> to vector<8xf32>
    %58 = vector.shape_cast %57 : vector<8xf32> to vector<8x1xf32>
    %59 = tpu.concatenate %43, %48, %53, %58 in 1 : vector<8x1xf32>, vector<8x1xf32>, vector<8x1xf32>, vector<8x1xf32> -> vector<8x4xf32>
    %60 = vector.broadcast %29 : vector<8x1xf32> to vector<8x4xf32>
    %61 = arith.mulf %59, %60 : vector<8x4xf32>
    %c0_46 = arith.constant 0 : index
    %c0_47 = arith.constant 0 : index
    %c0_48 = arith.constant 0 : index
    %c0_49 = arith.constant 0 : index
    %62 = vector.load %arg11[%c0_46, %c0_47, %c0_48, %c0_49] : memref<1x1x8x4xf32, #tpu.memory_space<vmem>>, vector<1x1x8x4xf32>
    %63 = vector.shape_cast %62 : vector<1x1x8x4xf32> to vector<8x4xf32>
    %64 = vector.shape_cast %61 : vector<8x4xf32> to vector<1x1x8x4xf32>
    tpu.vector_store %arg11[%c0_46, %c0_47, %c0_48, %c0_49], %64 {strides = array<i32>} : memref<1x1x8x4xf32, #tpu.memory_space<vmem>>, vector<1x1x8x4xf32>,
    return
  }
  func.func @transform_0(%arg0: i32, %arg1: i32, %arg2: i32) -> (i32, i32, i32, i32) {
    %c0_i32 = arith.constant 0 : i32
    %c0_i32_0 = arith.constant 0 : i32
    return %arg0, %arg2, %arg1, %c0_i32 : i32, i32, i32, i32
  }
  func.func @transform_1(%arg0: i32, %arg1: i32, %arg2: i32) -> (i32, i32, i32, i32) {
    %c0_i32 = arith.constant 0 : i32
    %c0_i32_0 = arith.constant 0 : i32
    %c0_i32_1 = arith.constant 0 : i32
    %c0_i32_2 = arith.constant 0 : i32
    return %arg0, %c0_i32, %c0_i32_0, %c0_i32_1 : i32, i32, i32, i32
  }
  func.func @transform_2(%arg0: i32, %arg1: i32, %arg2: i32) -> (i32, i32, i32, i32) {
    %c0_i32 = arith.constant 0 : i32
    %c0_i32_0 = arith.constant 0 : i32
    %c0_i32_1 = arith.constant 0 : i32
    %c0_i32_2 = arith.constant 0 : i32
    return %arg0, %c0_i32, %c0_i32_0, %c0_i32_1 : i32, i32, i32, i32
  }
  func.func @transform_3(%arg0: i32, %arg1: i32, %arg2: i32) -> (i32, i32, i32, i32) {
    %c0_i32 = arith.constant 0 : i32
    %c0_i32_0 = arith.constant 0 : i32
    return %arg0, %arg2, %arg1, %c0_i32 : i32, i32, i32, i32
  }
  func.func @transform_4(%arg0: i32, %arg1: i32, %arg2: i32) -> (i32, i32, i32, i32) {
    %c0_i32 = arith.constant 0 : i32
    %c0_i32_0 = arith.constant 0 : i32
    %c0_i32_1 = arith.constant 0 : i32
    return %arg0, %c0_i32, %arg1, %c0_i32_0 : i32, i32, i32, i32
  }
  func.func @transform_5(%arg0: i32, %arg1: i32, %arg2: i32) -> (i32, i32, i32) {
    %c0_i32 = arith.constant 0 : i32
    %c0_i32_0 = arith.constant 0 : i32
    return %arg0, %arg1, %c0_i32 : i32, i32, i32
  }
  func.func @transform_6(%arg0: i32, %arg1: i32, %arg2: i32) -> (i32, i32, i32) {
    %c0_i32 = arith.constant 0 : i32
    %c0_i32_0 = arith.constant 0 : i32
    %c0_i32_1 = arith.constant 0 : i32
    return %arg0, %c0_i32, %c0_i32_0 : i32, i32, i32
  }
  func.func @transform_7(%arg0: i32, %arg1: i32, %arg2: i32) -> (i32, i32, i32, i32) {
    %c0_i32 = arith.constant 0 : i32
    %c0_i32_0 = arith.constant 0 : i32
    return %arg0, %arg2, %arg1, %c0_i32 : i32, i32, i32, i32
  }
  func.func @transform_8(%arg0: i32, %arg1: i32, %arg2: i32) -> (i32, i32, i32, i32) {
    %c0_i32 = arith.constant 0 : i32
    %c0_i32_0 = arith.constant 0 : i32
    return %arg0, %arg2, %arg1, %c0_i32 : i32, i32, i32, i32
  }
}

</mosaic_0001>

<llo_original>
// kernel: tpu_custom_call.1
$region0: #{tpu_custom_call.1}
  #allocation0 [shape = 'u32[]', space=smem, size = 0x4, offset = 0x4, fixed_abs, tag = 'smem constant byte address 0x4 - core index']
  #allocation1 [shape = 'u32[144,128]{1,0:T(1,128)}', space=vmem, size = 0x12000, scoped, tag = 'internal scratch']
  %s0 = inlined_call_operand.vmem [shape: f32[2,4,8,30], index: 0, kind: input, shape index: {}]
  %s1 = inlined_call_operand.vmem [shape: f32[2,4,30,8], index: 1, kind: input, shape index: {}]
  %s2 = inlined_call_operand.vmem [shape: f32[2,4,8,40], index: 2, kind: input, shape index: {}]
  %s3 = inlined_call_operand.vmem [shape: f32[2,4,8,8], index: 3, kind: input, shape index: {}]
  %s4 = inlined_call_operand.vmem [shape: f32[2,4,8,8], index: 4, kind: input, shape index: {}]
  %s5 = inlined_call_operand.vmem [shape: f32[2,8,1], index: 5, kind: input, shape index: {}]
  %s6 = inlined_call_operand.vmem [shape: f32[2,1,8], index: 6, kind: input, shape index: {}]
  %s7 = inlined_call_operand.hbm [shape: f32[2,4,8,40], index: 7, kind: output, shape index: {0}]
  %s8 = inlined_call_operand.vmem [shape: f32[2,4,8,4], index: 8, kind: output, shape index: {1}]
  %9 = xla_tuple %s7, %s8
  %s10 = sld [smem:[#allocation0]]
  $region69: #{tpu_custom_call.1} parent=0
    _
  %s12 = ssub.s32 1, %s10
  %s13 = scalar_select 0, %s12, %s10
  $region1: #{tpu_custom_call.1} parent=0
    #allocation2 [shape = 'u8[8192]{0}', space=vmem, size = 0x2000, scoped, tag = 'output window, operand 0']
    #allocation3 [shape = 's32[2]{0}', space=sflag, size = 0x8, scoped, tag = 'scoped memory for tpu_custom_call.1']
    %14 = vsyncpa [#allocation3], 0
    %s15 = scalar_lea.sflag [#allocation3], 1
    %16 = vsyncpa %s15, 0
    loop: start=0, step=1, limit=10
    $region2: #{tpu_custom_call.1} parent=1 // loop_pre_header
      _
    $region3: #{tpu_custom_call.1} parent=1 // loop_header
      %s18 = sphi 0, %s22
      %p19 = scmp.ge.s32.totalorder %s18, 10
      %s25 = sphi 0, %s44
      %s26 = sphi 0, %s40
      %s27 = sphi 0, %s36
      %s28 = sphi 0, %s25
      %s29 = sphi 0, %s26
      %s30 = sphi 0, %s27
      %s31 = sphi 0, %s28
      %s32 = sphi 0, %s29
      %s33 = sphi 0, %s30
      %s51 = sphi 0, %s53
      %s54 = sphi 0, %s51
      %s55 = sphi 0, %s54
      %s71 = sphi 0, %s55
      %s77 = sphi 0, %s79
      %s80 = sphi 0, %s77
      %s81 = sphi 0, %s80
      %s97 = sphi 0, %s81
      %s103 = sphi 0, %s105
      %s106 = sphi 0, %s103
      %s107 = sphi 0, %s106
      %s123 = sphi 0, %s107
      %s133 = sphi 0, %s135
      %s136 = sphi 0, %s133
      %s137 = sphi 0, %s136
      %s153 = sphi 0, %s137
      %s161 = sphi 0, %s163
      %s164 = sphi 0, %s161
      %s165 = sphi 0, %s164
      %s181 = sphi 0, %s165
      %s189 = sphi 0, %s191
      %s192 = sphi 0, %s189
      %s193 = sphi 0, %s192
      %s209 = sphi 0, %s193
      %s215 = sphi 0, %s217
      %s218 = sphi 0, %s215
      %s219 = sphi 0, %s218
      %s235 = sphi 0, %s219
      %s245 = sphi 0, %s247
      %s248 = sphi 0, %s245
      %s249 = sphi 0, %s248
      %s265 = sphi 0, %s249
      %s275 = sphi 0, %s277
      %s278 = sphi 0, %s275
      %s279 = sphi 0, %s278
      %s295 = sphi 0, %s279
    $region4: #{tpu_custom_call.1} parent=1 // loop_header_branch
      %21 = sbr.rel (%p19) target = $region8
    $region5: #{tpu_custom_call.1} parent=1 // loop_body
      %s23 = ssub.s32 %s18, 1
      %s24 = ssub.s32 %s18, 2
      %s34 = sadd.s32 1, %s27
      %p35 = scmp.ge.s32.totalorder %s34, 4
      %s36 = scalar_select %p35, 0, %s34
      %s37 = sadd.s32 1, %s26
      %s38 = scalar_select %p35, %s37, %s26
      %p39 = scmp.ge.s32.totalorder %s38, 1
      %s40 = scalar_select %p39, 0, %s38
      %s41 = sadd.s32 1, %s25
      %s42 = scalar_select %p39, %s41, %s25
      %p43 = scmp.ge.s32.totalorder %s42, 2
      %s44 = scalar_select %p43, 0, %s42
      %s45 = ssub.s32 %s25, %s44
      %s46 = ssub.s32 %s27, %s36
      %s47 = sor.u32 %s45, %s46
      %s48 = ssub.s32 %s26, %s40
      %s49 = sor.u32 %s47, %s48
      %p50 = scmp.eq.s32.totalorder %s49, 0
      %s52 = sadd.s32 %s51, 1
      %s53 = scalar_select %p50, %s51, %s52
      %p56 = pneg %p50
      %p57 = scmp.eq.s32.totalorder %s18, 7
      %p58 = por %p56, %p57
      %p59 = scmp.ne.s32.totalorder %s51, %s54
      %p60 = scmp.eq.s32.totalorder %s18, 0
      %p61 = por %p59, %p60
      %p62 = scmp.ne.s32.totalorder %s51, %s54
      %p63 = scmp.eq.s32.totalorder %s23, 7
      %p64 = por %p62, %p63
      %p65 = scmp.ne.s32.totalorder %s54, %s55
      %p66 = scmp.eq.s32.totalorder %s23, 0
      %p67 = por %p65, %p66
      %p68 = scmp.ne.s32.totalorder %s54, %s55
      %p69 = scmp.eq.s32.totalorder %s24, 7
      %p70 = por %p68, %p69
      %p72 = scmp.ne.s32.totalorder %s55, %s71
      %p73 = scmp.eq.s32.totalorder %s24, 0
      %p74 = por %p72, %p73
      %s75 = ssub.s32 %s25, %s44
      %p76 = scmp.eq.s32.totalorder %s75, 0
      %s78 = sadd.s32 %s77, 1
      %s79 = scalar_select %p76, %s77, %s78
      %p82 = pneg %p76
      %p83 = scmp.eq.s32.totalorder %s18, 7
      %p84 = por %p82, %p83
      %p85 = scmp.ne.s32.totalorder %s77, %s80
      %p86 = scmp.eq.s32.totalorder %s18, 0
      %p87 = por %p85, %p86
      %p88 = scmp.ne.s32.totalorder %s77, %s80
      %p89 = scmp.eq.s32.totalorder %s23, 7
      %p90 = por %p88, %p89
      %p91 = scmp.ne.s32.totalorder %s80, %s81
      %p92 = scmp.eq.s32.totalorder %s23, 0
      %p93 = por %p91, %p92
      %p94 = scmp.ne.s32.totalorder %s80, %s81
      %p95 = scmp.eq.s32.totalorder %s24, 7
      %p96 = por %p94, %p95
      %p98 = scmp.ne.s32.totalorder %s81, %s97
      %p99 = scmp.eq.s32.totalorder %s24, 0
      %p100 = por %p98, %p99
      %s101 = ssub.s32 %s25, %s44
      %p102 = scmp.eq.s32.totalorder %s101, 0
      %s104 = sadd.s32 %s103, 1
      %s105 = scalar_select %p102, %s103, %s104
      %p108 = pneg %p102
      %p109 = scmp.eq.s32.totalorder %s18, 7
      %p110 = por %p108, %p109
      %p111 = scmp.ne.s32.totalorder %s103, %s106
      %p112 = scmp.eq.s32.totalorder %s18, 0
      %p113 = por %p111, %p112
      %p114 = scmp.ne.s32.totalorder %s103, %s106
      %p115 = scmp.eq.s32.totalorder %s23, 7
      %p116 = por %p114, %p115
      %p117 = scmp.ne.s32.totalorder %s106, %s107
      %p118 = scmp.eq.s32.totalorder %s23, 0
      %p119 = por %p117, %p118
      %p120 = scmp.ne.s32.totalorder %s106, %s107
      %p121 = scmp.eq.s32.totalorder %s24, 7
      %p122 = por %p120, %p121
      %p124 = scmp.ne.s32.totalorder %s107, %s123
      %p125 = scmp.eq.s32.totalorder %s24, 0
      %p126 = por %p124, %p125
      %s127 = ssub.s32 %s25, %s44
      %s128 = ssub.s32 %s27, %s36
      %s129 = sor.u32 %s127, %s128
      %s130 = ssub.s32 %s26, %s40
      %s131 = sor.u32 %s129, %s130
      %p132 = scmp.eq.s32.totalorder %s131, 0
      %s134 = sadd.s32 %s133, 1
      %s135 = scalar_select %p132, %s133, %s134
      %p138 = pneg %p132
      %p139 = scmp.eq.s32.totalorder %s18, 7
      %p140 = por %p138, %p139
      %p141 = scmp.ne.s32.totalorder %s133, %s136
      %p142 = scmp.eq.s32.totalorder %s18, 0
      %p143 = por %p141, %p142
      %p144 = scmp.ne.s32.totalorder %s133, %s136
      %p145 = scmp.eq.s32.totalorder %s23, 7
      %p146 = por %p144, %p145
      %p147 = scmp.ne.s32.totalorder %s136, %s137
      %p148 = scmp.eq.s32.totalorder %s23, 0
      %p149 = por %p147, %p148
      %p150 = scmp.ne.s32.totalorder %s136, %s137
      %p151 = scmp.eq.s32.totalorder %s24, 7
      %p152 = por %p150, %p151
      %p154 = scmp.ne.s32.totalorder %s137, %s153
      %p155 = scmp.eq.s32.totalorder %s24, 0
      %p156 = por %p154, %p155
      %s157 = ssub.s32 %s25, %s44
      %s158 = ssub.s32 %s26, %s40
      %s159 = sor.u32 %s157, %s158
      %p160 = scmp.eq.s32.totalorder %s159, 0
      %s162 = sadd.s32 %s161, 1
      %s163 = scalar_select %p160, %s161, %s162
      %p166 = pneg %p160
      %p167 = scmp.eq.s32.totalorder %s18, 7
      %p168 = por %p166, %p167
      %p169 = scmp.ne.s32.totalorder %s161, %s164
      %p170 = scmp.eq.s32.totalorder %s18, 0
      %p171 = por %p169, %p170
      %p172 = scmp.ne.s32.totalorder %s161, %s164
      %p173 = scmp.eq.s32.totalorder %s23, 7
      %p174 = por %p172, %p173
      %p175 = scmp.ne.s32.totalorder %s164, %s165
      %p176 = scmp.eq.s32.totalorder %s23, 0
      %p177 = por %p175, %p176
      %p178 = scmp.ne.s32.totalorder %s164, %s165
      %p179 = scmp.eq.s32.totalorder %s24, 7
      %p180 = por %p178, %p179
      %p182 = scmp.ne.s32.totalorder %s165, %s181
      %p183 = scmp.eq.s32.totalorder %s24, 0
      %p184 = por %p182, %p183
      %s185 = ssub.s32 %s25, %s44
      %s186 = ssub.s32 %s26, %s40
      %s187 = sor.u32 %s185, %s186
      %p188 = scmp.eq.s32.totalorder %s187, 0
      %s190 = sadd.s32 %s189, 1
      %s191 = scalar_select %p188, %s189, %s190
      %p194 = pneg %p188
      %p195 = scmp.eq.s32.totalorder %s18, 7
      %p196 = por %p194, %p195
      %p197 = scmp.ne.s32.totalorder %s189, %s192
      %p198 = scmp.eq.s32.totalorder %s18, 0
      %p199 = por %p197, %p198
      %p200 = scmp.ne.s32.totalorder %s189, %s192
      %p201 = scmp.eq.s32.totalorder %s23, 7
      %p202 = por %p200, %p201
      %p203 = scmp.ne.s32.totalorder %s192, %s193
      %p204 = scmp.eq.s32.totalorder %s23, 0
      %p205 = por %p203, %p204
      %p206 = scmp.ne.s32.totalorder %s192, %s193
      %p207 = scmp.eq.s32.totalorder %s24, 7
      %p208 = por %p206, %p207
      %p210 = scmp.ne.s32.totalorder %s193, %s209
      %p211 = scmp.eq.s32.totalorder %s24, 0
      %p212 = por %p210, %p211
      %s213 = ssub.s32 %s25, %s44
      %p214 = scmp.eq.s32.totalorder %s213, 0
      %s216 = sadd.s32 %s215, 1
      %s217 = scalar_select %p214, %s215, %s216
      %p220 = pneg %p214
      %p221 = scmp.eq.s32.totalorder %s18, 7
      %p222 = por %p220, %p221
      %p223 = scmp.ne.s32.totalorder %s215, %s218
      %p224 = scmp.eq.s32.totalorder %s18, 0
      %p225 = por %p223, %p224
      %p226 = scmp.ne.s32.totalorder %s215, %s218
      %p227 = scmp.eq.s32.totalorder %s23, 7
      %p228 = por %p226, %p227
      %p229 = scmp.ne.s32.totalorder %s218, %s219
      %p230 = scmp.eq.s32.totalorder %s23, 0
      %p231 = por %p229, %p230
      %p232 = scmp.ne.s32.totalorder %s218, %s219
      %p233 = scmp.eq.s32.totalorder %s24, 7
      %p234 = por %p232, %p233
      %p236 = scmp.ne.s32.totalorder %s219, %s235
      %p237 = scmp.eq.s32.totalorder %s24, 0
      %p238 = por %p236, %p237
      %s239 = ssub.s32 %s25, %s44
      %s240 = ssub.s32 %s27, %s36
      %s241 = sor.u32 %s239, %s240
      %s242 = ssub.s32 %s26, %s40
      %s243 = sor.u32 %s241, %s242
      %p244 = scmp.eq.s32.totalorder %s243, 0
      %s246 = sadd.s32 %s245, 1
      %s247 = scalar_select %p244, %s245, %s246
      %p250 = pneg %p244
      %p251 = scmp.eq.s32.totalorder %s18, 7
      %p252 = por %p250, %p251
      %p253 = scmp.ne.s32.totalorder %s245, %s248
      %p254 = scmp.eq.s32.totalorder %s18, 0
      %p255 = por %p253, %p254
      %p256 = scmp.ne.s32.totalorder %s245, %s248
      %p257 = scmp.eq.s32.totalorder %s23, 7
      %p258 = por %p256, %p257
      %p259 = scmp.ne.s32.totalorder %s248, %s249
      %p260 = scmp.eq.s32.totalorder %s23, 0
      %p261 = por %p259, %p260
      %p262 = scmp.ne.s32.totalorder %s248, %s249
      %p263 = scmp.eq.s32.totalorder %s24, 7
      %p264 = por %p262, %p263
      %p266 = scmp.ne.s32.totalorder %s249, %s265
      %p267 = scmp.eq.s32.totalorder %s24, 0
      %p268 = por %p266, %p267
      %s269 = ssub.s32 %s25, %s44
      %s270 = ssub.s32 %s27, %s36
      %s271 = sor.u32 %s269, %s270
      %s272 = ssub.s32 %s26, %s40
      %s273 = sor.u32 %s271, %s272
      %p274 = scmp.eq.s32.totalorder %s273, 0
      %s276 = sadd.s32 %s275, 1
      %s277 = scalar_select %p274, %s275, %s276
      %p280 = pneg %p274
      %p281 = scmp.eq.s32.totalorder %s18, 7
      %p282 = por %p280, %p281
      %p283 = scmp.ne.s32.totalorder %s275, %s278
      %p284 = scmp.eq.s32.totalorder %s18, 0
      %p285 = por %p283, %p284
      %p286 = scmp.ne.s32.totalorder %s275, %s278
      %p287 = scmp.eq.s32.totalorder %s23, 7
      %p288 = por %p286, %p287
      %p289 = scmp.ne.s32.totalorder %s278, %s279
      %p290 = scmp.eq.s32.totalorder %s23, 0
      %p291 = por %p289, %p290
      %p292 = scmp.ne.s32.totalorder %s278, %s279
      %p293 = scmp.eq.s32.totalorder %s24, 7
      %p294 = por %p292, %p293
      %p296 = scmp.ne.s32.totalorder %s279, %s295
      %p297 = scmp.eq.s32.totalorder %s24, 0
      %p298 = por %p296, %p297
      %p299 = scmp.le.s32.totalorder 1, %s18
      %p300 = scmp.lt.s32.totalorder %s18, 9
      %p301 = pnand %p299, %p300
      %p302 = pneg %p301
      // Predicated region
      $region9: #{tpu_custom_call.1} parent=5 // pred_check
        _
      $region10: #{tpu_custom_call.1} parent=5 // pred_check_branch
        %304 = sbr.rel (%p301) target = $region12
      $region11: #{tpu_custom_call.1} parent=5 // pred_region
        %s305 = ssub.s32 %s18, 1
      $region12: #{tpu_custom_call.1} parent=5 // pred_fallthru
        _
      %p306 = scmp.lt.s32.totalorder %s18, 8
      // Predicated region
      $region13: #{tpu_custom_call.1} parent=5 // pred_check
        %p307 = pneg %p306
      $region14: #{tpu_custom_call.1} parent=5 // pred_check_branch
        %309 = sbr.rel (%p307) target = $region16
      $region15: #{tpu_custom_call.1} parent=5 // pred_region
        // Predicated region
        $region17: #{tpu_custom_call.1} parent=15 // pred_check
          %p310 = pneg %p61
        $region18: #{tpu_custom_call.1} parent=15 // pred_check_branch
          %312 = sbr.rel (%p310) target = $region20
        $region19: #{tpu_custom_call.1} parent=15 // pred_region
          %p313 = scmp.lt.s32.totalorder %s25, 1
          %s314 = scalar_select %p313, %s25, 1
          %p315 = scmp.lt.s32.totalorder %s27, 3
          %s316 = scalar_select %p315, %s27, 3
          %p317 = scmp.lt.s32.totalorder %s26, 0
          %s318 = scalar_select %p317, %s26, 0
          %s319 = sadd.s32 %s318, %s316
          %s320 = smul.addr %s314, 4
          %s321 = sadd.s32 %s319, %s320
          %s322 = smul.addr %s321, 8
          %s323 = scalar_lea.vmem %s0, %s322
        $region20: #{tpu_custom_call.1} parent=15 // pred_fallthru
          _
        // Predicated region
        $region21: #{tpu_custom_call.1} parent=15 // pred_check
          %p324 = pneg %p87
        $region22: #{tpu_custom_call.1} parent=15 // pred_check_branch
          %326 = sbr.rel (%p324) target = $region24
        $region23: #{tpu_custom_call.1} parent=15 // pred_region
          %p327 = scmp.lt.s32.totalorder %s25, 1
          %s328 = scalar_select %p327, %s25, 1
          %s329 = smul.addr %s328, 16
          %s330 = smul.addr %s329, 8
          %s331 = scalar_lea.vmem %s1, %s330
        $region24: #{tpu_custom_call.1} parent=15 // pred_fallthru
          _
        // Predicated region
        $region25: #{tpu_custom_call.1} parent=15 // pred_check
          %p332 = pneg %p113
        $region26: #{tpu_custom_call.1} parent=15 // pred_check_branch
          %334 = sbr.rel (%p332) target = $region28
        $region27: #{tpu_custom_call.1} parent=15 // pred_region
          %p335 = scmp.lt.s32.totalorder %s25, 1
          %s336 = scalar_select %p335, %s25, 1
          %s337 = smul.addr %s336, 4
          %s338 = smul.addr %s337, 8
          %s339 = scalar_lea.vmem %s2, %s338
        $region28: #{tpu_custom_call.1} parent=15 // pred_fallthru
          _
        // Predicated region
        $region29: #{tpu_custom_call.1} parent=15 // pred_check
          %p340 = pneg %p143
        $region30: #{tpu_custom_call.1} parent=15 // pred_check_branch
          %342 = sbr.rel (%p340) target = $region32
        $region31: #{tpu_custom_call.1} parent=15 // pred_region
          %p343 = scmp.lt.s32.totalorder %s25, 1
          %s344 = scalar_select %p343, %s25, 1
          %p345 = scmp.lt.s32.totalorder %s27, 3
          %s346 = scalar_select %p345, %s27, 3
          %p347 = scmp.lt.s32.totalorder %s26, 0
          %s348 = scalar_select %p347, %s26, 0
          %s349 = sadd.s32 %s348, %s346
          %s350 = smul.addr %s344, 4
          %s351 = sadd.s32 %s349, %s350
          %s352 = smul.addr %s351, 8
          %s353 = scalar_lea.vmem %s3, %s352
        $region32: #{tpu_custom_call.1} parent=15 // pred_fallthru
          _
        // Predicated region
        $region33: #{tpu_custom_call.1} parent=15 // pred_check
          %p354 = pneg %p171
        $region34: #{tpu_custom_call.1} parent=15 // pred_check_branch
          %356 = sbr.rel (%p354) target = $region36
        $region35: #{tpu_custom_call.1} parent=15 // pred_region
          %p357 = scmp.lt.s32.totalorder %s25, 1
          %s358 = scalar_select %p357, %s25, 1
          %p359 = scmp.lt.s32.totalorder %s26, 0
          %s360 = scalar_select %p359, %s26, 0
          %s361 = smul.addr %s358, 4
          %s362 = sadd.s32 %s360, %s361
          %s363 = smul.addr %s362, 8
          %s364 = scalar_lea.vmem %s4, %s363
        $region36: #{tpu_custom_call.1} parent=15 // pred_fallthru
          _
        // Predicated region
        $region37: #{tpu_custom_call.1} parent=15 // pred_check
          %p365 = pneg %p199
        $region38: #{tpu_custom_call.1} parent=15 // pred_check_branch
          %367 = sbr.rel (%p365) target = $region40
        $region39: #{tpu_custom_call.1} parent=15 // pred_region
          %p368 = scmp.lt.s32.totalorder %s25, 1
          %s369 = scalar_select %p368, %s25, 1
          %p370 = scmp.lt.s32.totalorder %s26, 0
          %s371 = scalar_select %p370, %s26, 0
          %s372 = sadd.s32 %s371, %s369
          %s373 = smul.addr %s372, 8
          %s374 = scalar_lea.vmem %s5, %s373
        $region40: #{tpu_custom_call.1} parent=15 // pred_fallthru
          _
        // Predicated region
        $region41: #{tpu_custom_call.1} parent=15 // pred_check
          %p375 = pneg %p225
        $region42: #{tpu_custom_call.1} parent=15 // pred_check_branch
          %377 = sbr.rel (%p375) target = $region44
        $region43: #{tpu_custom_call.1} parent=15 // pred_region
          %p378 = scmp.lt.s32.totalorder %s25, 1
          %s379 = scalar_select %p378, %s25, 1
          %s380 = scalar_lea.vmem %s6, %s379
        $region44: #{tpu_custom_call.1} parent=15 // pred_fallthru
          _
      $region16: #{tpu_custom_call.1} parent=5 // pred_fallthru
        _
      %p381 = scmp.le.s32.totalorder 1, %s18
      %p382 = scmp.lt.s32.totalorder %s18, 9
      %p383 = pnand %p381, %p382
      %p384 = pneg %p383
      // Predicated region
      $region45: #{tpu_custom_call.1} parent=5 // pred_check
        _
      $region46: #{tpu_custom_call.1} parent=5 // pred_check_branch
        %386 = sbr.rel (%p383) target = $region48
      $region47: #{tpu_custom_call.1} parent=5 // pred_region
        %s387 = ssub.s32 %s18, 1
        %p388 = scmp.lt.s32.totalorder %s28, 1
        %s389 = scalar_select %p388, %s28, 1
        %p390 = scmp.lt.s32.totalorder %s30, 3
        %s391 = scalar_select %p390, %s30, 3
        %p392 = scmp.lt.s32.totalorder %s29, 0
        %s393 = scalar_select %p392, %s29, 0
        %s394 = sadd.s32 %s393, %s391
        %s395 = smul.addr %s389, 4
        %s396 = sadd.s32 %s394, %s395
        %s397 = smul.addr %s396, 8
        %s398 = scalar_lea.vmem %s0, %s397
        %p399 = pneg %p67
        %p400 = pneg %p64
        %p401 = scmp.lt.s32.totalorder %s28, 1
        %s402 = scalar_select %p401, %s28, 1
        %s403 = smul.addr %s402, 16
        %s404 = smul.addr %s403, 8
        %s405 = scalar_lea.vmem %s1, %s404
        %p406 = pneg %p93
        %p407 = pneg %p90
        %p408 = scmp.lt.s32.totalorder %s28, 1
        %s409 = scalar_select %p408, %s28, 1
        %s410 = smul.addr %s409, 4
        %s411 = smul.addr %s410, 8
        %s412 = scalar_lea.vmem %s2, %s411
        %p413 = pneg %p119
        %p414 = pneg %p116
        %p415 = scmp.lt.s32.totalorder %s28, 1
        %s416 = scalar_select %p415, %s28, 1
        %p417 = scmp.lt.s32.totalorder %s30, 3
        %s418 = scalar_select %p417, %s30, 3
        %p419 = scmp.lt.s32.totalorder %s29, 0
        %s420 = scalar_select %p419, %s29, 0
        %s421 = sadd.s32 %s420, %s418
        %s422 = smul.addr %s416, 4
        %s423 = sadd.s32 %s421, %s422
        %s424 = smul.addr %s423, 8
        %s425 = scalar_lea.vmem %s3, %s424
        %p426 = pneg %p149
        %p427 = pneg %p146
        %p428 = scmp.lt.s32.totalorder %s28, 1
        %s429 = scalar_select %p428, %s28, 1
        %p430 = scmp.lt.s32.totalorder %s29, 0
        %s431 = scalar_select %p430, %s29, 0
        %s432 = smul.addr %s429, 4
        %s433 = sadd.s32 %s431, %s432
        %s434 = smul.addr %s433, 8
        %s435 = scalar_lea.vmem %s4, %s434
        %p436 = pneg %p177
        %p437 = pneg %p174
        %p438 = scmp.lt.s32.totalorder %s28, 1
        %s439 = scalar_select %p438, %s28, 1
        %p440 = scmp.lt.s32.totalorder %s29, 0
        %s441 = scalar_select %p440, %s29, 0
        %s442 = sadd.s32 %s441, %s439
        %s443 = smul.addr %s442, 8
        %s444 = scalar_lea.vmem %s5, %s443
        %p445 = pneg %p205
        %p446 = pneg %p202
        %p447 = scmp.lt.s32.totalorder %s28, 1
        %s448 = scalar_select %p447, %s28, 1
        %s449 = scalar_lea.vmem %s6, %s448
        %p450 = pneg %p231
        %p451 = pneg %p228
        %p452 = pneg %p261
        %p453 = pneg %p258
        %s454 = sand.u32 %s248, 1
        %s455 = scalar_lea.sflag [#allocation3], %s454
        %s456 = sand.u32 %s248, 1
        %s457 = smul.addr %s456, 8
        %s458 = scalar_lea.vmem [#allocation2], %s457
        %p459 = pneg %p291
        %p460 = pneg %p288
        %p461 = scmp.lt.s32.totalorder %s28, 1
        %s462 = scalar_select %p461, %s28, 1
        %p463 = scmp.lt.s32.totalorder %s30, 3
        %s464 = scalar_select %p463, %s30, 3
        %p465 = scmp.lt.s32.totalorder %s29, 0
        %s466 = scalar_select %p465, %s29, 0
        %s467 = sadd.s32 %s466, %s464
        %s468 = smul.addr %s462, 4
        %s469 = sadd.s32 %s467, %s468
        %s470 = smul.addr %s469, 8
        %s471 = scalar_lea.vmem %s8, %s470
        %p472 = scmp.lt.s32.totalorder %s28, 1
        %s473 = scalar_select %p472, %s28, 1
        %p474 = scmp.lt.s32.totalorder %s30, 3
        %s475 = scalar_select %p474, %s30, 3
        %p476 = scmp.lt.s32.totalorder %s29, 0
        %s477 = scalar_select %p476, %s29, 0
        %s478 = sadd.s32 %s477, %s475
        %s479 = smul.addr %s473, 4
        %s480 = sadd.s32 %s478, %s479
        %s481 = smul.addr %s480, 8
        %s482 = scalar_lea.vmem %s0, %s481
        %p483 = scmp.lt.s32.totalorder %s28, 1
        %s484 = scalar_select %p483, %s28, 1
        %s485 = smul.addr %s484, 16
        %s486 = smul.addr %s485, 8
        %s487 = scalar_lea.vmem %s1, %s486
        %p488 = scmp.lt.s32.totalorder %s28, 1
        %s489 = scalar_select %p488, %s28, 1
        %s490 = smul.addr %s489, 4
        %s491 = smul.addr %s490, 8
        %s492 = scalar_lea.vmem %s2, %s491
        %p493 = scmp.lt.s32.totalorder %s28, 1
        %s494 = scalar_select %p493, %s28, 1
        %p495 = scmp.lt.s32.totalorder %s30, 3
        %s496 = scalar_select %p495, %s30, 3
        %p497 = scmp.lt.s32.totalorder %s29, 0
        %s498 = scalar_select %p497, %s29, 0
        %s499 = sadd.s32 %s498, %s496
        %s500 = smul.addr %s494, 4
        %s501 = sadd.s32 %s499, %s500
        %s502 = smul.addr %s501, 8
        %s503 = scalar_lea.vmem %s3, %s502
        %p504 = scmp.lt.s32.totalorder %s28, 1
        %s505 = scalar_select %p504, %s28, 1
        %p506 = scmp.lt.s32.totalorder %s29, 0
        %s507 = scalar_select %p506, %s29, 0
        %s508 = smul.addr %s505, 4
        %s509 = sadd.s32 %s507, %s508
        %s510 = smul.addr %s509, 8
        %s511 = scalar_lea.vmem %s4, %s510
        %p512 = scmp.lt.s32.totalorder %s28, 1
        %s513 = scalar_select %p512, %s28, 1
        %p514 = scmp.lt.s32.totalorder %s29, 0
        %s515 = scalar_select %p514, %s29, 0
        %s516 = sadd.s32 %s515, %s513
        %s517 = smul.addr %s516, 8
        %s518 = scalar_lea.vmem %s5, %s517
        %p519 = scmp.lt.s32.totalorder %s28, 1
        %s520 = scalar_select %p519, %s28, 1
        %s521 = scalar_lea.vmem %s6, %s520
        %p522 = scmp.lt.s32.totalorder %s28, 1
        %s523 = scalar_select %p522, %s28, 1
        %p524 = scmp.lt.s32.totalorder %s30, 3
        %s525 = scalar_select %p524, %s30, 3
        %p526 = scmp.lt.s32.totalorder %s29, 0
        %s527 = scalar_select %p526, %s29, 0
        %s528 = sadd.s32 %s527, %s525
        %s529 = smul.addr %s523, 4
        %s530 = sadd.s32 %s528, %s529
        %s531 = smul.addr %s530, 8
        %s532 = scalar_lea.vmem %s8, %s531
        %v533 = vld [vmem:[%s482] sm:$0xff]
        %s534 = smul.u32 %s30, 32
        %s535 = scalar_lea.vmem %s487, %s534
        %v536 = vld [vmem:[%s535] sm:$0xff]
        %v537 = vld [vmem:[%s535 + $0x8] sm:$0xff]
        %v538 = vld [vmem:[%s535 + $0x10] sm:$0xff]
        %v539 = vld [vmem:[%s535 + $0x18] sm:$0x3f]
        %v540 = vld [vmem:[%s518] sm:$0xff]
        %v541 = vld [vmem:[%s521] sm:$0x1]
        %543 = vset.pattern.permute.xlu0 0
        %544 = vperm.xlu0 %543, %v540
        %v545 = vpop.permute.xlu0 %544
        %v548 = vlaneseq
        %v549 = vshrl.u32 %v548, 7
        %v550 = vsub.s32 0, %v549
        %v551 = vrot.slane %v541, %v550
        %v553 = vmul.f32 %v545, %v551
        %v554 = vsub.f32 %v553, 1.0
        %v555 = vmul.f32 %v554, 100000.0
        %v556 = vld [vmem:[%s503] sm:$0xff]
        %vm557 = vcmask 244736
        %v559 = vsel %vm557, %v533, 0
        %vm561 = vcmask 1045504
        %v563 = vsel %vm561, %v539, 0
        %565 = vmatprep.subr.mxu0 0.0
        %566 = vmatpush1.msra.mxu0 %v536
        %567 = vmatprep.subr.mxu0 0.0
        %568 = vmatpush1.msra.mxu0 %v537
        %569 = vmatprep.subr.mxu0 0.0
        %570 = vmatpush1.msra.mxu0 %v538
        %571 = vmatprep.subr.mxu0 0.0
        %572 = vmatpush1.msra.mxu0 %v563
        %573 = vmatprep.subr.mxu0 0.0
        %574 = vmatpush1.msra.mxu0 0.0
        %575 = vmatprep.subr.mxu0 0.0
        %576 = vmatpush1.msra.mxu0 0.0
        %577 = vmatprep.subr.mxu0 0.0
        %578 = vmatpush1.msra.mxu0 0.0
        %579 = vmatprep.subr.mxu0 0.0
        %580 = vmatpush1.msra.mxu0 0.0
        %581 = vmatprep.subr.mxu0 0.0
        %582 = vmatpush1.msra.mxu0 0.0
        %583 = vmatprep.subr.mxu0 0.0
        %584 = vmatpush1.msra.mxu0 0.0
        %585 = vmatprep.subr.mxu0 0.0
        %586 = vmatpush1.msra.mxu0 0.0
        %587 = vmatprep.subr.mxu0 0.0
        %588 = vmatpush1.msra.mxu0 0.0
        %589 = vmatprep.subr.mxu0 0.0
        %590 = vmatpush1.msra.mxu0 0.0
        %591 = vmatprep.subr.mxu0 0.0
        %592 = vmatpush1.msra.mxu0 0.0
        %593 = vmatprep.subr.mxu0 0.0
        %594 = vmatpush1.msra.mxu0 0.0
        %595 = vmatprep.subr.mxu0 0.0
        %596 = vmatpush1.msra.mxu0 0.0
        %597 = vmatprep.subr.mxu0 0.0
        %598 = vmatpush1.msra.mxu0 0.0
        %599 = vmatprep.subr.mxu0 0.0
        %600 = vmatpush1.msra.mxu0 0.0
        %601 = vmatprep.subr.mxu0 0.0
        %602 = vmatpush1.msra.mxu0 0.0
        %603 = vmatprep.subr.mxu0 0.0
        %604 = vmatpush1.msra.mxu0 0.0
        %605 = vmatprep.subr.mxu0 0.0
        %606 = vmatpush1.msra.mxu0 0.0
        %607 = vmatprep.subr.mxu0 0.0
        %608 = vmatpush1.msra.mxu0 0.0
        %609 = vmatprep.subr.mxu0 0.0
        %610 = vmatpush1.msra.mxu0 0.0
        %611 = vmatprep.subr.mxu0 0.0
        %612 = vmatpush1.msra.mxu0 0.0
        %613 = vmatprep.subr.mxu0 0.0
        %614 = vmatpush1.msra.mxu0 0.0
        %615 = vmatprep.subr.mxu0 0.0
        %616 = vmatpush1.msra.mxu0 0.0
        %617 = vmatprep.subr.mxu0 0.0
        %618 = vmatpush1.msra.mxu0 0.0
        %619 = vmatprep.subr.mxu0 0.0
        %620 = vmatpush1.msra.mxu0 0.0
        %621 = vmatprep.subr.mxu0 0.0
        %622 = vmatpush1.msra.mxu0 0.0
        %623 = vmatprep.subr.mxu0 0.0
        %624 = vmatpush1.msra.mxu0 0.0
        %625 = vmatprep.subr.mxu0 0.0
        %626 = vmatpush1.msra.mxu0 0.0
        %627 = vmatprep.subr.mxu0 0.0
        %628 = vmatpush1.msra.mxu0 0.0
        %629 = vmatprep.mubr.f32.mxu0 0.0
        %630 = vmatmul.mubr.f32.gmra.mrb[0].mxu0 %v559
        %v631 = vpop.f32.mrb[0].mxu0
        %v632 = vadd.f32 %v556, %v631
        %v633 = vpop.f32.mrb[0].mxu0
        %634 = vdwg.mxu0
        %v635 = vadd.f32 %v632, %v555
        %vm636 = vcmask 64512
        %v637 = vsel %vm636, %v635, -inf
        %638 = vmax.xlane.f32.xlu0 %v637
        %v639 = vpop.xlane.xlu0 %638
        %v640 = vsub.f32 %v635, %v639
        %v641 = vmul.f32 %v640, 1.442695
        %v642 = vpow.pop %v641
        %v643 = vsel %vm636, %v642, 0.0
        %644 = vadd.xlane.f32.xlu0 %v643
        %v645 = vpop.xlane.xlu0 %644
        %v646 = vrcp.pop %v645
        %v647 = vmul.f32 1.0, %v646
        %s648 = smul.u32 %s30, 8
        %s649 = scalar_lea.vmem %s492, %s648
        %v650 = vld [vmem:[%s649] sm:$0xff]
        %v652 = vsel %vm636, %v642, 0
        %654 = vmatprep.subr.mxu0 0.0
        %655 = vmatpush1.msra.mxu0 %v650
        %656 = vmatprep.subr.mxu0 0.0
        %657 = vmatpush1.msra.mxu0 0.0
        %658 = vmatprep.subr.mxu0 0.0
        %659 = vmatpush1.msra.mxu0 0.0
        %660 = vmatprep.subr.mxu0 0.0
        %661 = vmatpush1.msra.mxu0 0.0
        %662 = vmatprep.subr.mxu0 0.0
        %663 = vmatpush1.msra.mxu0 0.0
        %664 = vmatprep.subr.mxu0 0.0
        %665 = vmatpush1.msra.mxu0 0.0
        %666 = vmatprep.subr.mxu0 0.0
        %667 = vmatpush1.msra.mxu0 0.0
        %668 = vmatprep.subr.mxu0 0.0
        %669 = vmatpush1.msra.mxu0 0.0
        %670 = vmatprep.subr.mxu0 0.0
        %671 = vmatpush1.msra.mxu0 0.0
        %672 = vmatprep.subr.mxu0 0.0
        %673 = vmatpush1.msra.mxu0 0.0
        %674 = vmatprep.subr.mxu0 0.0
        %675 = vmatpush1.msra.mxu0 0.0
        %676 = vmatprep.subr.mxu0 0.0
        %677 = vmatpush1.msra.mxu0 0.0
        %678 = vmatprep.subr.mxu0 0.0
        %679 = vmatpush1.msra.mxu0 0.0
        %680 = vmatprep.subr.mxu0 0.0
        %681 = vmatpush1.msra.mxu0 0.0
        %682 = vmatprep.subr.mxu0 0.0
        %683 = vmatpush1.msra.mxu0 0.0
        %684 = vmatprep.subr.mxu0 0.0
        %685 = vmatpush1.msra.mxu0 0.0
        %686 = vmatprep.subr.mxu0 0.0
        %687 = vmatpush1.msra.mxu0 0.0
        %688 = vmatprep.subr.mxu0 0.0
        %689 = vmatpush1.msra.mxu0 0.0
        %690 = vmatprep.subr.mxu0 0.0
        %691 = vmatpush1.msra.mxu0 0.0
        %692 = vmatprep.subr.mxu0 0.0
        %693 = vmatpush1.msra.mxu0 0.0
        %694 = vmatprep.subr.mxu0 0.0
        %695 = vmatpush1.msra.mxu0 0.0
        %696 = vmatprep.subr.mxu0 0.0
        %697 = vmatpush1.msra.mxu0 0.0
        %698 = vmatprep.subr.mxu0 0.0
        %699 = vmatpush1.msra.mxu0 0.0
        %700 = vmatprep.subr.mxu0 0.0
        %701 = vmatpush1.msra.mxu0 0.0
        %702 = vmatprep.subr.mxu0 0.0
        %703 = vmatpush1.msra.mxu0 0.0
        %704 = vmatprep.subr.mxu0 0.0
        %705 = vmatpush1.msra.mxu0 0.0
        %706 = vmatprep.subr.mxu0 0.0
        %707 = vmatpush1.msra.mxu0 0.0
        %708 = vmatprep.subr.mxu0 0.0
        %709 = vmatpush1.msra.mxu0 0.0
        %710 = vmatprep.subr.mxu0 0.0
        %711 = vmatpush1.msra.mxu0 0.0
        %712 = vmatprep.subr.mxu0 0.0
        %713 = vmatpush1.msra.mxu0 0.0
        %714 = vmatprep.subr.mxu0 0.0
        %715 = vmatpush1.msra.mxu0 0.0
        %716 = vmatprep.subr.mxu0 0.0
        %717 = vmatpush1.msra.mxu0 0.0
        %718 = vmatprep.mubr.f32.mxu0 0.0
        %719 = vmatmul.mubr.f32.gmra.mrb[0].mxu0 %v652
        %v720 = vpop.f32.mrb[0].mxu0
        %v721 = vadd.f32 0.0, %v720
        %v722 = vpop.f32.mrb[0].mxu0
        %723 = vdwg.mxu0
        %v724 = vmul.f32 %v721, %v647
        %vm725 = vcmask 326656
        %726 = vst.msk [vmem:[%s458] sm:$0xff] %vm725, %v724
        %v727 = vld [vmem:[%s511] sm:$0xff]
        %v728 = vmul.f32 %v642, %v727
        %v729 = vsel %vm636, %v728, 0.0
        %730 = vadd.xlane.f32.xlu0 %v729
        %v731 = vpop.xlane.xlu0 %730
        %s732 = scalar_lea.vmem %s511, 8
        %v733 = vld [vmem:[%s732] sm:$0xff]
        %v734 = vmul.f32 %v642, %v733
        %v735 = vsel %vm636, %v734, 0.0
        %736 = vadd.xlane.f32.xlu0 %v735
        %v737 = vpop.xlane.xlu0 %736
        %s738 = scalar_lea.vmem %s511, 16
        %v739 = vld [vmem:[%s738] sm:$0xff]
        %v740 = vmul.f32 %v642, %v739
        %v741 = vsel %vm636, %v740, 0.0
        %742 = vadd.xlane.f32.xlu0 %v741
        %v743 = vpop.xlane.xlu0 %742
        %s744 = scalar_lea.vmem %s511, 24
        %v745 = vld [vmem:[%s744] sm:$0xff]
        %v746 = vmul.f32 %v642, %v745
        %v747 = vsel %vm636, %v746, 0.0
        %748 = vadd.xlane.f32.xlu0 %v747
        %v749 = vpop.xlane.xlu0 %748
        %vm750 = vcmask 7168
        %v751 = vsel %vm750, %v731, %v737
        %vm752 = vcmask 15360
        %v753 = vsel %vm752, %v751, %v743
        %vm754 = vcmask 23552
        %v755 = vsel %vm754, %v753, %v749
        %v756 = vmul.f32 %v755, %v647
        %vm757 = vcmask 31744
        %758 = vst.msk [vmem:[%s532] sm:$0xff] %vm757, %v756
        %s759 = sand.u32 %s248, 1
        %s760 = scalar_lea.sflag [#allocation3], %s759
        %s761 = sand.u32 %s248, 1
        %s762 = smul.addr %s761, 8
        %s763 = scalar_lea.vmem [#allocation2], %s762
        %p764 = scmp.lt.s32.totalorder %s28, 1
        %s765 = scalar_select %p764, %s28, 1
        %p766 = scmp.lt.s32.totalorder %s30, 3
        %s767 = scalar_select %p766, %s30, 3
        %p768 = scmp.lt.s32.totalorder %s29, 0
        %s769 = scalar_select %p768, %s29, 0
        %s770 = sadd.s32 %s769, %s767
        %s771 = smul.addr %s765, 4
        %s772 = sadd.s32 %s770, %s771
        %s773 = smul.addr %s772, 8
        %s774 = scalar_lea.vmem %s8, %s773
        // Predicated region
        $region49: #{tpu_custom_call.1} parent=47 // pred_check
          %p775 = pneg %p258
        $region50: #{tpu_custom_call.1} parent=47 // pred_check_branch
          %777 = sbr.rel (%p775) target = $region52
        $region51: #{tpu_custom_call.1} parent=47 // pred_region
          %s779 = ssub.s32 128, 128
          %780 = vsyncadd %s760, %s779
          %s781 = sadd.s32 %s29, %s30
          %s782 = smul.addr %s28, 4
          %s783 = sadd.s32 %s781, %s782
          %s784 = smul.addr %s783, 128
          %s785 = scalar_lea.hbm %s7, %s784
          %s787 = sshll.u32 %s763, 4
          %s788 = int_to_ptr.vmem [resolvable:$true] %s787
          %790 = dma.vmem_to_hbm [thread:$0]  %s788, 128, %s785, %s760
        $region52: #{tpu_custom_call.1} parent=47 // pred_fallthru
          _
        // Predicated region
        $region53: #{tpu_custom_call.1} parent=47 // pred_check
          %p791 = pneg %p288
        $region54: #{tpu_custom_call.1} parent=47 // pred_check_branch
          %793 = sbr.rel (%p791) target = $region56
        $region55: #{tpu_custom_call.1} parent=47 // pred_region
          _
        $region56: #{tpu_custom_call.1} parent=47 // pred_fallthru
          _
      $region48: #{tpu_custom_call.1} parent=5 // pred_fallthru
        _
      %p794 = scmp.le.s32.totalorder 2, %s18
      // Predicated region
      $region57: #{tpu_custom_call.1} parent=5 // pred_check
        %p795 = pneg %p794
      $region58: #{tpu_custom_call.1} parent=5 // pred_check_branch
        %797 = sbr.rel (%p795) target = $region60
      $region59: #{tpu_custom_call.1} parent=5 // pred_region
        %s798 = ssub.s32 %s18, 2
        // Predicated region
        $region61: #{tpu_custom_call.1} parent=59 // pred_check
          %p799 = pneg %p264
        $region62: #{tpu_custom_call.1} parent=59 // pred_check_branch
          %801 = sbr.rel (%p799) target = $region64
        $region63: #{tpu_custom_call.1} parent=59 // pred_region
          %s802 = sand.u32 %s249, 1
          %s803 = scalar_lea.sflag [#allocation3], %s802
          %s804 = sand.u32 %s249, 1
          %s805 = smul.addr %s804, 8
          %s806 = scalar_lea.vmem [#allocation2], %s805
          %807 = dma.done %s803, 128
        $region64: #{tpu_custom_call.1} parent=59 // pred_fallthru
          _
        // Predicated region
        $region65: #{tpu_custom_call.1} parent=59 // pred_check
          %p808 = pneg %p294
        $region66: #{tpu_custom_call.1} parent=59 // pred_check_branch
          %810 = sbr.rel (%p808) target = $region68
        $region67: #{tpu_custom_call.1} parent=59 // pred_region
          %p811 = scmp.lt.s32.totalorder %s31, 1
          %s812 = scalar_select %p811, %s31, 1
          %p813 = scmp.lt.s32.totalorder %s33, 3
          %s814 = scalar_select %p813, %s33, 3
          %p815 = scmp.lt.s32.totalorder %s32, 0
          %s816 = scalar_select %p815, %s32, 0
          %s817 = sadd.s32 %s816, %s814
          %s818 = smul.addr %s812, 4
          %s819 = sadd.s32 %s817, %s818
          %s820 = smul.addr %s819, 8
          %s821 = scalar_lea.vmem %s8, %s820
        $region68: #{tpu_custom_call.1} parent=59 // pred_fallthru
          _
      $region60: #{tpu_custom_call.1} parent=5 // pred_fallthru
        _
    $region6: #{tpu_custom_call.1} parent=1 // loop_footer
      %s22 = sadd.s32 1, %s18
    $region7: #{tpu_custom_call.1} parent=1 // loop_footer_branch
      %17 = sbr.rel target = $region3
    $region8: #{tpu_custom_call.1} parent=1 // loop_exit
      _
    %822 = vsyncpa [#allocation3], 1
    %s823 = scalar_lea.sflag [#allocation3], 1
    %824 = vsyncpa %s823, 1

</llo_original>
